<compile_context>
chip_gen: v7x
topology: tpu7x:2x2x1
jax: 0.10.0
libtpu: 0.0.40
codegen_flags: <defaults>
</compile_context>

<pallas_src>
import functools

import jax
import jax.numpy as jnp
from jax.experimental import pallas as pl
from jax.experimental.pallas import tpu as pltpu

_LANE = 128
_MAX_LANE_WIDTH = 16384          # widest lane-dense slab we try
_MIN_STEPS = 8                   # >= 2 TCs (v7x) x ~4 pipelined steps each
_MIN_BLOCK_BYTES = 1 << 20       # don't shrink blocks below ~1 MiB chasing steps
_MAX_BLOCK_BYTES = 8 << 20       # v5e/v6e sweet spot; v7x capped lower via VMEM
_HEADROOM_BYTES = 4 << 20
_FALLBACK_VMEM_CAP = 64 << 20    # conservative default (v7x per-TC VMEM)


def _normalize_kernel(x_ref, o_ref, *, slope, offset):
    # Elementwise affine on the VPU.  slope/offset are Python floats ->
    # compile-time immediates (no captured constant arrays, no broadcasts).
    # Compute in f32 (free: mem-bound) and cast on store so bf16/fp16 inputs
    # match a float32-compute-then-cast reference.
    x = x_ref[...]
    y = x.astype(jnp.float32) * slope + offset
    o_ref[...] = y.astype(o_ref.dtype)


def _sublane_multiple(itemsize: int) -> int:
    # Packed-sublane multiple: f32 -> 8, bf16/f16 -> 16, int8/fp8 -> 32.
    return {4: 8, 2: 16, 1: 32}.get(itemsize, 8)


def _round_up(x: int, m: int) -> int:
    return (x + m - 1) // m * m


def _vmem_capacity_bytes() -> int:
    """Per-TensorCore VMEM capacity; conservative fallback if query fails."""
    try:
        cap = int(pltpu.get_tpu_info().vmem_capacity_bytes)
        if cap >= (16 << 20):
            return cap
    except Exception:
        pass
    return _FALLBACK_VMEM_CAP


def _snap_rows_to_divisor(m: int, tm: int, sub: int) -> int:
    """Round tm down (in sublane steps) to a divisor of m, if one is nearby."""
    if tm >= m:
        return m
    if m % sub != 0 or tm <= sub:
        return tm
    t = (tm // sub) * sub
    lo = max(sub, t // 2)
    while t >= lo:
        if m % t == 0:
            return t
        t -= sub
    return tm


def _plan(total: int, itemsize: int, vmem_cap: int):
    """Pick a lane-dense 2D view (M, L), row tile tm, and pipeline depth."""
    assert total % _LANE == 0
    sub = _sublane_multiple(itemsize)
    # ~cap/16 per block: v7x (64 MiB) -> 4 MiB blocks, v5e/v6e (128 MiB) -> 8 MiB.
    target_block_bytes = max(_MIN_BLOCK_BYTES, min(_MAX_BLOCK_BYTES, vmem_cap // 16))

    cands = [_LANE * m for m in range(1, _MAX_LANE_WIDTH // _LANE + 1)
             if total % (_LANE * m) == 0]

    def widest(min_rows):
        ok = [c for c in cands if total // c >= min_rows]
        return max(ok) if ok else None

    # Widest lane slab that still leaves enough rows for a deep parallel grid
    # (feeds both v7x TensorCores); degrade gracefully for small tensors.
    L = (widest(_MIN_STEPS * sub) or widest(2 * sub) or widest(sub) or max(cands))
    M = total // L
    row_bytes = L * itemsize

    if M <= sub:
        return M, L, M, 2                    # single full-extent block

    def rows_for(nbytes):
        return max(sub, (nbytes // row_bytes) // sub * sub)

    tm = rows_for(target_block_bytes)
    # Prefer >= _MIN_STEPS grid steps, but never below the ~1 MiB block floor.
    rows_for_steps = (M // _MIN_STEPS) // sub * sub
    if rows_for_steps >= rows_for(_MIN_BLOCK_BYTES):
        tm = min(tm, rows_for_steps)
    tm = min(tm, M)
    # Snap tm to a divisor of M so the final grid step is a full, unmasked block.
    tm = _snap_rows_to_divisor(M, tm, sub)

    steps = pl.cdiv(M, tm)
    block_bytes = tm * row_bytes
    # Triple-buffer in/out on deep grids (smooths DMA jitter on v7x where a
    # block is only ~1 us of HBM traffic); stay within half of physical VMEM.
    n_buf = 3 if steps >= 4 else 2
    if 2 * n_buf * block_bytes + _HEADROOM_BYTES > vmem_cap // 2:
        n_buf = 2
    return M, L, tm, n_buf


def _block_specs(tm: int, L: int, n_buf: int):
    idx = lambda i: (i, 0)
    if n_buf == 2:
        return pl.BlockSpec((tm, L), idx), pl.BlockSpec((tm, L), idx)
    try:
        return (pl.BlockSpec((tm, L), idx, pipeline_mode=pl.Buffered(n_buf)),
                pl.BlockSpec((tm, L), idx, pipeline_mode=pl.Buffered(n_buf)))
    except (TypeError, AttributeError):
        return pl.BlockSpec((tm, L), idx), pl.BlockSpec((tm, L), idx)


def _run_affine_2d(x2, slope, offset, tm, n_buf, vmem_limit, donate):
    M, L = x2.shape
    in_spec, out_spec = _block_specs(tm, L, n_buf)
    kernel = functools.partial(_normalize_kernel, slope=slope, offset=offset)
    return pl.pallas_call(
        kernel,
        out_shape=jax.ShapeDtypeStruct((M, L), x2.dtype),
        grid_spec=pltpu.PrefetchScalarGridSpec(
            num_scalar_prefetch=0,
            grid=(pl.cdiv(M, tm),),
            in_specs=[in_spec],
            out_specs=out_spec,
        ),
        compiler_params=pltpu.CompilerParams(
            dimension_semantics=("parallel",),
            vmem_limit_bytes=vmem_limit,
        ),
        input_output_aliases={0: 0} if donate else {},
    )(x2)


def make_normalize(min_out: float, max_out: float,
                   min_in: float = 0.0, max_in: float = 1.0,
                   *, donate_input: bool = False):
    """Returns a callable equivalent to Normalize(min_out, max_out, ...).forward.

    If donate_input=True the kernel writes in place (input_output_aliases);
    only use it when the caller donates x at the jit boundary, otherwise XLA
    inserts a defensive copy that costs extra HBM traffic.
    """
    if max_in == min_in:
        raise ValueError("Normalize: max_in must differ from min_in")
    slope = float((max_out - min_out) / (max_in - min_in))
    offset = float(min_out - slope * min_in)

    def normalize(x: jax.Array) -> jax.Array:
        if not jnp.issubdtype(x.dtype, jnp.floating):
            # Match torch's float promotion for non-float inputs.
            x = x.astype(jnp.float32)
        orig_shape = x.shape
        total = int(x.size)
        if total == 0:
            return x
        itemsize = int(x.dtype.itemsize)
        vmem_cap = _vmem_capacity_bytes()
        vmem_limit = vmem_cap // 2           # 32 MiB on v7x, 64 MiB on v5e/v6e

        if total % _LANE == 0:
            M, L, tm, n_buf = _plan(total, itemsize, vmem_cap)
            out2 = _run_affine_2d(x.reshape(M, L), slope, offset, tm, n_buf,
                                  vmem_limit, donate_input)
            return out2.reshape(orig_shape)

        # Pad-to-128 fallback: lane-dense stores even for awkward flat sizes.
        # Costs one extra pad/slice pass over HBM.
        # TODO(synk): a manual-DMA ragged pipeline would avoid that extra pass.
        padded = _round_up(total, 1024)
        flat = jnp.pad(x.reshape(total), (0, padded - total))
        M, L, tm, n_buf = _plan(padded, itemsize, vmem_cap)
        out2 = _run_affine_2d(flat.reshape(M, L), slope, offset, tm, n_buf,
                              vmem_limit, True)   # padded copy is ours: alias
        return out2.reshape(padded)[:total].reshape(orig_shape)

    return normalize


if __name__ == "__main__":
    # Deterministic example: Normalize(min_out=-1.2, max_out=1.2) applied to
    # an NCHW activation tensor, like a realistic-voltage conversion layer.
    key = jax.random.PRNGKey(0)
    x = jax.random.uniform(key, (2, 4, 16, 16), dtype=jnp.float32)

    normalize = make_normalize(min_out=-1.2, max_out=1.2, min_in=0.0, max_in=1.0)
    out = jax.block_until_ready(jax.jit(normalize)(x))

    # Reference check against plain JAX (same math as the PyTorch module).
    slope = (1.2 - (-1.2)) / (1.0 - 0.0)
    offset = -1.2 - slope * 0.0
    ref = offset + slope * x
    assert out.shape == x.shape and out.dtype == x.dtype
    assert float(jnp.max(jnp.abs(out - ref))) < 1e-6

    print("KERNEL_OK")
</pallas_src>

<mosaic_0001>
module attributes {stable_mosaic.version = 11 : i64} {
  func.func @_normalize_kernel(%arg0: i32, %arg1: memref<16x128xf32, #tpu.memory_space<vmem>>, %arg2: memref<16x128xf32, #tpu.memory_space<vmem>>) attributes {dimension_semantics = [#tpu.dimension_semantics<parallel>], iteration_bounds = array<i64: 1>, scalar_prefetch = 0 : i64, scratch_operands = 0 : i64, tpu.core_type = #tpu.core_type<tc>, window_params = [{transform_indices = @transform_0, window_bounds = array<i64: 16, 128>}, {transform_indices = @transform_1, window_bounds = array<i64: 16, 128>}]} {
    %c0 = arith.constant 0 : index
    %c0_0 = arith.constant 0 : index
    %0 = vector.load %arg1[%c0, %c0_0] : memref<16x128xf32, #tpu.memory_space<vmem>>, vector<16x128xf32>
    %cst = arith.constant 2.400000e+00 : f32
    %1 = vector.broadcast %cst : f32 to vector<16x128xf32>
    %2 = arith.mulf %0, %1 : vector<16x128xf32>
    %cst_1 = arith.constant -1.200000e+00 : f32
    %3 = vector.broadcast %cst_1 : f32 to vector<16x128xf32>
    %4 = arith.addf %2, %3 : vector<16x128xf32>
    %c0_2 = arith.constant 0 : index
    %c0_3 = arith.constant 0 : index
    %5 = vector.load %arg2[%c0_2, %c0_3] : memref<16x128xf32, #tpu.memory_space<vmem>>, vector<16x128xf32>
    tpu.vector_store %arg2[%c0_2, %c0_3], %4 {strides = array<i32>} : memref<16x128xf32, #tpu.memory_space<vmem>>, vector<16x128xf32>,
    return
  }
  func.func @transform_0(%arg0: i32) -> (i32, i32) {
    %c0_i32 = arith.constant 0 : i32
    %c0_i32_0 = arith.constant 0 : i32
    return %arg0, %c0_i32 : i32, i32
  }
  func.func @transform_1(%arg0: i32) -> (i32, i32) {
    %c0_i32 = arith.constant 0 : i32
    %c0_i32_0 = arith.constant 0 : i32
    return %arg0, %c0_i32 : i32, i32
  }
}

</mosaic_0001>

<llo_original>
// kernel: normalize.1
$region0: #{normalize.1}
  #allocation0 [shape = 'u32[]', space=smem, size = 0x4, offset = 0x4, fixed_abs, tag = 'smem constant byte address 0x4 - core index']
  #allocation1 [shape = 'u32[144,128]{1,0:T(1,128)}', space=vmem, size = 0x12000, scoped, tag = 'internal scratch']
  %s0 = inlined_call_operand.vmem [shape: f32[16,128], index: 0, kind: input, shape index: {}]
  %s1 = inlined_call_operand.vmem [shape: f32[16,128], index: 1, kind: output, shape index: {}]
  %s2 = sld [smem:[#allocation0]]
  $region14: #{normalize.1} parent=0
    _
  %s4 = ssub.s32 1, %s2
  %s5 = scalar_select 0, %s4, %s2
  // Predicated region
  $region2: #{normalize.1} parent=0 // pred_check
    _
  $region3: #{normalize.1} parent=0 // pred_check_branch
    %7 = sbr.rel (0) target = $region5
  $region4: #{normalize.1} parent=0 // pred_region
    _
  $region5: #{normalize.1} parent=0 // pred_fallthru
    _
  %v8 = vld [vmem:[%s0] sm:$0xff]
  %v9 = vld [vmem:[%s0 + $0x8] sm:$0xff]
  %v10 = vmul.f32 %v8, 2.4
  %v11 = vmul.f32 %v9, 2.4
  %v12 = vadd.f32 %v10, -1.2
  %v13 = vadd.f32 %v11, -1.2
  %14 = vst [vmem:[%s1] sm:$0xff] %v12
  %15 = vst [vmem:[%s1 + $0x8] sm:$0xff] %v13
  // Predicated region
  $region6: #{normalize.1} parent=0 // pred_check
    _
  $region7: #{normalize.1} parent=0 // pred_check_branch
    %17 = sbr.rel (0) target = $region9
  $region8: #{normalize.1} parent=0 // pred_region
    _
  $region9: #{normalize.1} parent=0 // pred_fallthru
    _
  // Predicated region
  $region10: #{normalize.1} parent=0 // pred_check
    _
  $region11: #{normalize.1} parent=0 // pred_check_branch
    %19 = sbr.rel (0) target = $region13
  $region12: #{normalize.1} parent=0 // pred_region
    _
  $region13: #{normalize.1} parent=0 // pred_fallthru
    _

</llo_original>
